<compile_context>
chip_gen: v6e
topology: v6e:2x2x1
jax: 0.10.0
libtpu: 0.0.40
codegen_flags: <defaults>
</compile_context>

<pallas_src>
import jax
import jax.numpy as jnp
from jax.experimental import pallas as pl
from jax.experimental.pallas import tpu as pltpu


_TB_MAX = 4096          # max batch-tile rows (~5 MiB double-buffered in/out @ f32)
_SINGLE_STEP_MAX = 128  # below this, one grid step (dispatch/DMA-latency bound anyway)


# ----------------------------- Pallas kernel --------------------------------
def _fused_extractor_kernel(x_ref, w1_ref, b1_ref, w2_ref, ein_ref, eout_ref,
                            b2_ref, o_ref):
    """Fused actor+critic 2-layer MLP with in-kernel NoisyLinear rank-1 noise.

    x:    (TB, F)   features (f32 or bf16; cast to bf16 in-kernel for the MXU)
    w1:   (F, 2H)   bf16    b1: (1, 2H) f32  -> h = relu(x @ w1 + b1)
    w2:   (2H, 2O)  bf16 block-diagonal      -> o = h @ w2 + b2
    ein:  (1, 2H)   f32  f(eps_in) on policy half, zeros on value half
    eout: (1, 2O)   f32  sigma_init * f(eps_out) on policy half, zeros on value half
    out:  (TB, 2O)  [:, :O] = latent_pi, [:, O:] = latent_vf
    """
    # layer 1: Linear + ReLU.  bf16 operands on the MXU, f32 accumulation,
    # f32 bias/ReLU epilogue on the VPU.
    xb = x_ref[...].astype(jnp.bfloat16)
    h = jnp.dot(xb, w1_ref[...], preferred_element_type=jnp.float32)
    h = jnp.maximum(h + b1_ref[...], 0.0)

    # layer 2: block-diagonal Linear — one lane-dense (128-wide) MXU pass for
    # both heads.  (MXU util is capped by the tiny model dims on v6e/v7x; fusing
    # a second independent extractor to 256 lanes would fill N if one exists.)
    o = jnp.dot(h.astype(jnp.bfloat16), w2_ref[...],
                preferred_element_type=jnp.float32)

    # NoisyLinear factorized-gaussian rank-1 correction (VPU mul + XLU reduce;
    # both slots have slack next to the MXU/store stream, so effectively free).
    #   coeff = h_pi . f(eps_in); "+ 1.0" carries the bias noise b_sigma*f(eps_out).
    # TODO(synk): this factorization is exact only while w_sigma/b_sigma are the
    # constant sigma_init (fresh init); a trained per-element sigma needs a second
    # matmul against (w_sigma * outer(eps_out, eps_in)) or host-side w_eff.
    coeff = jnp.sum(h * ein_ref[...], axis=-1, keepdims=True)       # (TB, 1)
    o = o + (coeff + 1.0) * eout_ref[...]

    o_ref[...] = (o + b2_ref[...]).astype(o_ref.dtype)


# ------------------------------- wrapper -------------------------------------
def _round_up(n, m):
    return ((n + m - 1) // m) * m


def _choose_batch_tile(B):
    if B <= _SINGLE_STEP_MAX:
        # One grid step, exact block (no ragged tail, no padding anywhere).
        return max(B, 1)
    # >= 2 grid steps so the "parallel" axis shards across both v7x TensorCores,
    # with tiles as large as possible (per-step overhead ~0.35us dominates small
    # tiles), capped so VMEM stays far below the scoped limit on every chip.
    return min(_TB_MAX, _round_up(-(-B // 2), 8))


def _fused_forward(x, w1, b1, w2, e_in, e_out, b2, *, pi_dim, out_dtype):
    """relu(x @ w1 + b1) @ w2 (+ rank-1 noise) + b2, split into (pi, vf)."""
    B, F = x.shape
    H2 = w1.shape[1]
    O2 = w2.shape[1]
    TB = _choose_batch_tile(B)

    out = pl.pallas_call(
        _fused_extractor_kernel,
        out_shape=jax.ShapeDtypeStruct((B, O2), out_dtype),
        grid=(pl.cdiv(B, TB),),                          # ragged last block is clipped
        in_specs=[
            pl.BlockSpec((TB, F), lambda i: (i, 0)),     # x: tiled over batch
            pl.BlockSpec((F, H2), lambda i: (0, 0)),     # w1: VMEM-resident
            pl.BlockSpec((1, H2), lambda i: (0, 0)),     # b1
            pl.BlockSpec((H2, O2), lambda i: (0, 0)),    # w2 (block-diagonal)
            pl.BlockSpec((1, H2), lambda i: (0, 0)),     # f(eps_in)        (zero-padded)
            pl.BlockSpec((1, O2), lambda i: (0, 0)),     # sigma*f(eps_out) (zero-padded)
            pl.BlockSpec((1, O2), lambda i: (0, 0)),     # b2 (mu)
        ],
        out_specs=pl.BlockSpec((TB, O2), lambda i: (i, 0)),
        compiler_params=pltpu.CompilerParams(
            dimension_semantics=("parallel",)),          # megacore on v7x
    )(x, w1, b1, w2, e_in, e_out, b2)

    # The pi/vf split is the module's interface; in a full policy jit these
    # slices fuse into the downstream action/value heads.
    return out[:, :pi_dim], out[:, pi_dim:]


_fused_forward_jit = jax.jit(_fused_forward,
                             static_argnames=("pi_dim", "out_dtype"))


# --------------------------- parameter construction --------------------------
def _scale_noise(x):
    # f(x) = sign(x) * sqrt(|x|)  (standard NoisyNet factorized noise transform)
    return jnp.sign(x) * jnp.sqrt(jnp.abs(x))


def _linear_init(key, in_f, out_f):
    """nn.Linear-style init. Returns PyTorch-layout W (out,in) and b (out,)."""
    k_w, k_b = jax.random.split(key)
    bound = 1.0 / jnp.sqrt(jnp.float32(in_f))
    w = jax.random.uniform(k_w, (out_f, in_f), jnp.float32, -bound, bound)
    b = jax.random.uniform(k_b, (out_f,), jnp.float32, -bound, bound)
    return w, b


class NoisyMlpExtractorPallas:
    """JAX/Pallas NoisyMlpExtractor(feature_dim, [64,64], ReLU, num_noisy_layers=2).

    Actor and critic are fused into one lane-dense (width-128) Pallas kernel;
    the NoisyLinear rank-1 noise is applied inside the kernel, so resampling
    noise never materializes an effective weight matrix.
    """

    def __init__(self, key, feature_dim=32, net_arch=(64, 64),
                 num_noisy_layers=2, sigma0=0.5, out_dtype=jnp.float32):
        net_arch = list(net_arch)
        assert len(net_arch) == 2, "this fused kernel expects net_arch=[H, O]"
        assert num_noisy_layers <= len(net_arch)
        H, O = net_arch
        self.latent_dim_pi = O
        self.latent_dim_vf = O
        self._H, self._O = H, O
        self._out_dtype = out_dtype
        self._sigma_init = sigma0 / jnp.sqrt(jnp.float32(H))

        k_p1, k_p2, k_v1, k_v2, k_noise = jax.random.split(key, 5)

        # raw PyTorch-layout f32 params (kept for the pure-JAX reference check)
        self.pw1, self.pb1 = _linear_init(k_p1, feature_dim, H)          # Linear
        self.pw2_mu, self.pb2_mu = _linear_init(k_p2, H, O)              # NoisyLinear mu
        self.pw2_sigma = jnp.full((O, H), self._sigma_init, jnp.float32)
        self.pb2_sigma = jnp.full((O,), self._sigma_init, jnp.float32)
        self.vw1, self.vb1 = _linear_init(k_v1, feature_dim, H)          # Linear
        self.vw2, self.vb2 = _linear_init(k_v2, H, O)                    # Linear

        # fused, lane-dense kernel arrays; weights in bf16 (MXU operands),
        # biases stay f32 (epilogue precision).  Static; independent of noise.
        self.W1 = jnp.concatenate([self.pw1.T, self.vw1.T],
                                  axis=1).astype(jnp.bfloat16)           # (F, 2H)
        self.B1 = jnp.concatenate([self.pb1, self.vb1])[None, :]         # (1, 2H) f32
        W2 = jnp.zeros((2 * H, 2 * O), jnp.float32)
        W2 = W2.at[:H, :O].set(self.pw2_mu.T)                            # policy block
        W2 = W2.at[H:, O:].set(self.vw2.T)                               # value block
        self.W2 = W2.astype(jnp.bfloat16)                                # (2H, 2O)
        self.B2 = jnp.concatenate([self.pb2_mu, self.vb2])[None, :]      # (1, 2O) f32

        self.resample_noise(k_noise)

    def resample_noise(self, key):
        """Resample factorized gaussian noise — only two 128-wide f32 vectors change."""
        k_in, k_out = jax.random.split(key)
        self.eps_in = _scale_noise(jax.random.normal(k_in, (self._H,), jnp.float32))
        self.eps_out = _scale_noise(jax.random.normal(k_out, (self._O,), jnp.float32))
        zH = jnp.zeros((self._H,), jnp.float32)
        zO = jnp.zeros((self._O,), jnp.float32)
        self.E_in = jnp.concatenate([self.eps_in, zH])[None, :]                       # (1, 2H)
        self.E_out = jnp.concatenate([self._sigma_init * self.eps_out, zO])[None, :]  # (1, 2O)

    def forward(self, features):
        return _fused_forward_jit(features, self.W1, self.B1, self.W2,
                                  self.E_in, self.E_out, self.B2,
                                  pi_dim=self.latent_dim_pi,
                                  out_dtype=self._out_dtype)

    def forward_actor(self, features):
        return self.forward(features)[0]

    def forward_critic(self, features):
        return self.forward(features)[1]


# ------------------------------------ main ------------------------------------
if __name__ == "__main__":
    key = jax.random.PRNGKey(0)
    k_params, k_x, k_x2 = jax.random.split(key, 3)

    FEATURE_DIM = 32
    model = NoisyMlpExtractorPallas(k_params, feature_dim=FEATURE_DIM,
                                    net_arch=(64, 64), num_noisy_layers=2)

    # --- references ------------------------------------------------------------
    def ref_forward_f32(x, m):
        # Exact PyTorch-semantics f32 reference (y = x @ W.T + b; NoisyLinear
        # with materialized effective weights).
        h_pi = jnp.maximum(x @ m.pw1.T + m.pb1, 0.0)
        w_eff = m.pw2_mu + m.pw2_sigma * jnp.outer(m.eps_out, m.eps_in)
        b_eff = m.pb2_mu + m.pb2_sigma * m.eps_out
        pi = h_pi @ w_eff.T + b_eff
        h_vf = jnp.maximum(x @ m.vw1.T + m.vb1, 0.0)
        vf = h_vf @ m.vw2.T + m.vb2
        return pi, vf

    def ref_forward_matched(x, m):
        # Precision-matched reference: same bf16 operands / f32 accumulation as
        # the kernel's data path (tight tolerance check).
        xb = x.astype(jnp.bfloat16)
        h = jnp.maximum(
            jnp.dot(xb, m.W1, preferred_element_type=jnp.float32) + m.B1, 0.0)
        o = jnp.dot(h.astype(jnp.bfloat16), m.W2,
                    preferred_element_type=jnp.float32)
        coeff = jnp.sum(h * m.E_in, axis=-1, keepdims=True)
        o = o + (coeff + 1.0) * m.E_out + m.B2
        return o[:, :m.latent_dim_pi], o[:, m.latent_dim_pi:]

    def check(x, m):
        pi, vf = m.forward(x)
        pi = jax.block_until_ready(pi)
        vf = jax.block_until_ready(vf)
        assert pi.shape == (x.shape[0], m.latent_dim_pi)
        assert vf.shape == (x.shape[0], m.latent_dim_vf)
        rp, rv = ref_forward_matched(x, m)
        assert jnp.allclose(pi, rp, atol=1e-3, rtol=1e-3), \
            float(jnp.max(jnp.abs(pi - rp)))
        assert jnp.allclose(vf, rv, atol=1e-3, rtol=1e-3), \
            float(jnp.max(jnp.abs(vf - rv)))
        # loose check vs true f32 semantics (bf16 operand rounding only)
        fp, fv = ref_forward_f32(x, m)
        assert jnp.allclose(pi, fp, atol=5e-2, rtol=5e-2)
        assert jnp.allclose(vf, fv, atol=5e-2, rtol=5e-2)

    # small smoke-test batch: single grid step, exact block, no pad/slice
    x_small = jax.random.normal(k_x, (2, FEATURE_DIM), jnp.float32)
    check(x_small, model)

    # ragged multi-step batch: exercises the cdiv grid + clipped last block and
    # >= 2 "parallel" grid steps (both v7x TensorCores)
    x_big = jax.random.normal(k_x2, (300, FEATURE_DIM), jnp.float32)
    check(x_big, model)

    # resample factorized noise (only two 128-wide vectors change; same kernel)
    model.resample_noise(jax.random.PRNGKey(1))
    check(x_small, model)

    print("KERNEL_OK")
</pallas_src>

<mosaic_0001>
module attributes {stable_mosaic.version = 11 : i64} {
  func.func @_fused_extractor_kernel(%arg0: i32, %arg1: memref<2x32xf32, #tpu.memory_space<vmem>>, %arg2: memref<32x128xbf16, #tpu.memory_space<vmem>>, %arg3: memref<1x128xf32, #tpu.memory_space<vmem>>, %arg4: memref<128x128xbf16, #tpu.memory_space<vmem>>, %arg5: memref<1x128xf32, #tpu.memory_space<vmem>>, %arg6: memref<1x128xf32, #tpu.memory_space<vmem>>, %arg7: memref<1x128xf32, #tpu.memory_space<vmem>>, %arg8: memref<2x128xf32, #tpu.memory_space<vmem>>) attributes {dimension_semantics = [#tpu.dimension_semantics<parallel>], iteration_bounds = array<i64: 1>, scalar_prefetch = 0 : i64, scratch_operands = 0 : i64, tpu.core_type = #tpu.core_type<tc>, window_params = [{transform_indices = @transform_0, window_bounds = array<i64: 2, 32>}, {pipeline_mode = #tpu.pipeline_mode<synchronous>, transform_indices = @transform_1, window_bounds = array<i64: 32, 128>}, {pipeline_mode = #tpu.pipeline_mode<synchronous>, transform_indices = @transform_2, window_bounds = array<i64: 1, 128>}, {pipeline_mode = #tpu.pipeline_mode<synchronous>, transform_indices = @transform_3, window_bounds = array<i64: 128, 128>}, {pipeline_mode = #tpu.pipeline_mode<synchronous>, transform_indices = @transform_4, window_bounds = array<i64: 1, 128>}, {pipeline_mode = #tpu.pipeline_mode<synchronous>, transform_indices = @transform_5, window_bounds = array<i64: 1, 128>}, {pipeline_mode = #tpu.pipeline_mode<synchronous>, transform_indices = @transform_6, window_bounds = array<i64: 1, 128>}, {transform_indices = @transform_7, window_bounds = array<i64: 2, 128>}]} {
    %c0 = arith.constant 0 : index
    %c0_0 = arith.constant 0 : index
    %0 = vector.load %arg1[%c0, %c0_0] : memref<2x32xf32, #tpu.memory_space<vmem>>, vector<2x32xf32>
    %1 = arith.truncf %0 : vector<2x32xf32> to vector<2x32xbf16>
    %c0_1 = arith.constant 0 : index
    %c0_2 = arith.constant 0 : index
    %2 = vector.load %arg2[%c0_1, %c0_2] : memref<32x128xbf16, #tpu.memory_space<vmem>>, vector<32x128xbf16>
    %cst = arith.constant dense<0.000000e+00> : vector<2x128xf32>
    %3 = tpu.matmul %1, %2, %cst {dimension_numbers = #tpu.dot_dimension_numbers<[1], [0], [0], [1], [0, 0, 1, 1], [], []>} : vector<2x32xbf16>, vector<32x128xbf16>, vector<2x128xf32> -> vector<2x128xf32>
    %c0_3 = arith.constant 0 : index
    %c0_4 = arith.constant 0 : index
    %4 = vector.load %arg3[%c0_3, %c0_4] : memref<1x128xf32, #tpu.memory_space<vmem>>, vector<1x128xf32>
    %5 = vector.broadcast %4 : vector<1x128xf32> to vector<2x128xf32>
    %6 = arith.addf %3, %5 : vector<2x128xf32>
    %cst_5 = arith.constant 0.000000e+00 : f32
    %7 = vector.broadcast %cst_5 : f32 to vector<2x128xf32>
    %8 = arith.maximumf %6, %7 : vector<2x128xf32>
    %9 = arith.truncf %8 : vector<2x128xf32> to vector<2x128xbf16>
    %c0_6 = arith.constant 0 : index
    %c0_7 = arith.constant 0 : index
    %10 = vector.load %arg4[%c0_6, %c0_7] : memref<128x128xbf16, #tpu.memory_space<vmem>>, vector<128x128xbf16>
    %cst_8 = arith.constant dense<0.000000e+00> : vector<2x128xf32>
    %11 = tpu.matmul %9, %10, %cst_8 {dimension_numbers = #tpu.dot_dimension_numbers<[1], [0], [0], [1], [0, 0, 1, 1], [], []>} : vector<2x128xbf16>, vector<128x128xbf16>, vector<2x128xf32> -> vector<2x128xf32>
    %c0_9 = arith.constant 0 : index
    %c0_10 = arith.constant 0 : index
    %12 = vector.load %arg5[%c0_9, %c0_10] : memref<1x128xf32, #tpu.memory_space<vmem>>, vector<1x128xf32>
    %13 = vector.broadcast %12 : vector<1x128xf32> to vector<2x128xf32>
    %14 = arith.mulf %8, %13 : vector<2x128xf32>
    %cst_11 = arith.constant dense<0.000000e+00> : vector<2xf32>
    %15 = vector.multi_reduction <add>, %14, %cst_11 [1] : vector<2x128xf32> to vector<2xf32>
    %16 = vector.shape_cast %15 : vector<2xf32> to vector<2x1xf32>
    %cst_12 = arith.constant 1.000000e+00 : f32
    %17 = vector.broadcast %cst_12 : f32 to vector<2x1xf32>
    %18 = arith.addf %16, %17 : vector<2x1xf32>
    %c0_13 = arith.constant 0 : index
    %c0_14 = arith.constant 0 : index
    %19 = vector.load %arg6[%c0_13, %c0_14] : memref<1x128xf32, #tpu.memory_space<vmem>>, vector<1x128xf32>
    %20 = vector.broadcast %18 : vector<2x1xf32> to vector<2x128xf32>
    %21 = vector.broadcast %19 : vector<1x128xf32> to vector<2x128xf32>
    %22 = arith.mulf %20, %21 : vector<2x128xf32>
    %23 = arith.addf %11, %22 : vector<2x128xf32>
    %c0_15 = arith.constant 0 : index
    %c0_16 = arith.constant 0 : index
    %24 = vector.load %arg7[%c0_15, %c0_16] : memref<1x128xf32, #tpu.memory_space<vmem>>, vector<1x128xf32>
    %25 = vector.broadcast %24 : vector<1x128xf32> to vector<2x128xf32>
    %26 = arith.addf %23, %25 : vector<2x128xf32>
    %c0_17 = arith.constant 0 : index
    %c0_18 = arith.constant 0 : index
    %27 = vector.load %arg8[%c0_17, %c0_18] : memref<2x128xf32, #tpu.memory_space<vmem>>, vector<2x128xf32>
    tpu.vector_store %arg8[%c0_17, %c0_18], %26 {strides = array<i32>} : memref<2x128xf32, #tpu.memory_space<vmem>>, vector<2x128xf32>,
    return
  }
  func.func @transform_0(%arg0: i32) -> (i32, i32) {
    %c0_i32 = arith.constant 0 : i32
    %c0_i32_0 = arith.constant 0 : i32
    return %arg0, %c0_i32 : i32, i32
  }
  func.func @transform_1(%arg0: i32) -> (i32, i32) {
    %c0_i32 = arith.constant 0 : i32
    %c0_i32_0 = arith.constant 0 : i32
    %c0_i32_1 = arith.constant 0 : i32
    return %c0_i32, %c0_i32_0 : i32, i32
  }
  func.func @transform_2(%arg0: i32) -> (i32, i32) {
    %c0_i32 = arith.constant 0 : i32
    %c0_i32_0 = arith.constant 0 : i32
    %c0_i32_1 = arith.constant 0 : i32
    return %c0_i32, %c0_i32_0 : i32, i32
  }
  func.func @transform_3(%arg0: i32) -> (i32, i32) {
    %c0_i32 = arith.constant 0 : i32
    %c0_i32_0 = arith.constant 0 : i32
    %c0_i32_1 = arith.constant 0 : i32
    return %c0_i32, %c0_i32_0 : i32, i32
  }
  func.func @transform_4(%arg0: i32) -> (i32, i32) {
    %c0_i32 = arith.constant 0 : i32
    %c0_i32_0 = arith.constant 0 : i32
    %c0_i32_1 = arith.constant 0 : i32
    return %c0_i32, %c0_i32_0 : i32, i32
  }
  func.func @transform_5(%arg0: i32) -> (i32, i32) {
    %c0_i32 = arith.constant 0 : i32
    %c0_i32_0 = arith.constant 0 : i32
    %c0_i32_1 = arith.constant 0 : i32
    return %c0_i32, %c0_i32_0 : i32, i32
  }
  func.func @transform_6(%arg0: i32) -> (i32, i32) {
    %c0_i32 = arith.constant 0 : i32
    %c0_i32_0 = arith.constant 0 : i32
    %c0_i32_1 = arith.constant 0 : i32
    return %c0_i32, %c0_i32_0 : i32, i32
  }
  func.func @transform_7(%arg0: i32) -> (i32, i32) {
    %c0_i32 = arith.constant 0 : i32
    %c0_i32_0 = arith.constant 0 : i32
    return %arg0, %c0_i32 : i32, i32
  }
}

</mosaic_0001>

<llo_original>
// kernel: _fused_forward.1
$region0: #{_fused_forward.1}
  #allocation0 [shape = 'u32[]', space=smem, size = 0x4, offset = 0x4, fixed_abs, tag = 'smem constant byte address 0x4 - core index']
  #allocation1 [shape = 'u32[144,128]{1,0:T(1,128)}', space=vmem, size = 0x12000, scoped, tag = 'internal scratch']
  %s0 = inlined_call_operand.hbm [shape: f32[2,32], index: 0, kind: input, shape index: {}]
  %s1 = inlined_call_operand.hbm [shape: bf16[32,128], index: 1, kind: input, shape index: {}]
  %s2 = inlined_call_operand.vmem [shape: f32[1,128], index: 2, kind: input, shape index: {}]
  %s3 = inlined_call_operand.hbm [shape: bf16[128,128], index: 3, kind: input, shape index: {}]
  %s4 = inlined_call_operand.vmem [shape: f32[1,128], index: 4, kind: input, shape index: {}]
  %s5 = inlined_call_operand.vmem [shape: f32[1,128], index: 5, kind: input, shape index: {}]
  %s6 = inlined_call_operand.vmem [shape: f32[1,128], index: 6, kind: input, shape index: {}]
  %s7 = inlined_call_operand.vmem [shape: f32[2,128], index: 7, kind: output, shape index: {}]
  %s8 = sld [smem:[#allocation0]]
  $region50: #{_fused_forward.1} parent=0
    _
  %s10 = ssub.s32 1, %s8
  %s11 = scalar_select 0, %s10, %s8
  $region1: #{_fused_forward.1} parent=0
    #allocation2 [shape = 'u8[1024]{0}', space=vmem, size = 0x400, scoped, tag = 'input window, operand 0, single buffered']
    #allocation3 [shape = 's32[1]{0}', space=sflag, size = 0x4, scoped, tag = 'scoped memory for _fused_forward.1']
    #allocation4 [shape = 'u8[8192]{0}', space=vmem, size = 0x2000, scoped, tag = 'input window, operand 1, single buffered']
    #allocation5 [shape = 's32[1]{0}', space=sflag, size = 0x4, scoped, tag = 'scoped memory for _fused_forward.1']
    #allocation6 [shape = 'u8[32768]{0}', space=vmem, size = 0x8000, scoped, tag = 'input window, operand 3, single buffered']
    %12 = vsyncpa [#allocation3], 0
    %13 = vsyncpa [#allocation5], 0
    // Predicated region
    $region2: #{_fused_forward.1} parent=1 // pred_check
      _
    $region3: #{_fused_forward.1} parent=1 // pred_check_branch
      %15 = sbr.rel (0) target = $region5
    $region4: #{_fused_forward.1} parent=1 // pred_region
      %s17 = ssub.s32 32, 32
      %18 = vsyncadd [#allocation3], %s17
      %s20 = sshll.u32 [#allocation2], 4
      %s21 = int_to_ptr.vmem [resolvable:$true] %s20
      %23 = dma.hbm_to_vmem [thread:$0]  %s0, 32, %s21, [#allocation3]
    $region5: #{_fused_forward.1} parent=1 // pred_fallthru
      _
    // Predicated region
    $region6: #{_fused_forward.1} parent=1 // pred_check
      _
    $region7: #{_fused_forward.1} parent=1 // pred_check_branch
      %25 = sbr.rel (0) target = $region9
    $region8: #{_fused_forward.1} parent=1 // pred_region
      %s27 = ssub.s32 256, 256
      %28 = vsyncadd [#allocation5], %s27
      %s29 = sshll.u32 [#allocation4], 4
      %s30 = int_to_ptr.vmem [resolvable:$true] %s29
      %35 = dma.hbm_to_vmem [thread:$0]  %s1, 256, %s30, [#allocation5], 64, 64, 4
    $region9: #{_fused_forward.1} parent=1 // pred_fallthru
      _
    // Predicated region
    $region10: #{_fused_forward.1} parent=1 // pred_check
      _
    $region11: #{_fused_forward.1} parent=1 // pred_check_branch
      %37 = sbr.rel (0) target = $region13
    $region12: #{_fused_forward.1} parent=1 // pred_region
      _
    $region13: #{_fused_forward.1} parent=1 // pred_fallthru
      _
    // Predicated region
    $region14: #{_fused_forward.1} parent=1 // pred_check
      _
    $region15: #{_fused_forward.1} parent=1 // pred_check_branch
      %39 = sbr.rel (0) target = $region17
    $region16: #{_fused_forward.1} parent=1 // pred_region
      %s41 = ssub.s32 1024, 1024
      %42 = vsyncadd [#allocation5], %s41
      %s43 = sshll.u32 [#allocation6], 4
      %s44 = int_to_ptr.vmem [resolvable:$true] %s43
      %49 = dma.hbm_to_vmem [thread:$0]  %s3, 1024, %s44, [#allocation5], 64, 64, 4
    $region17: #{_fused_forward.1} parent=1 // pred_fallthru
      _
    // Predicated region
    $region18: #{_fused_forward.1} parent=1 // pred_check
      _
    $region19: #{_fused_forward.1} parent=1 // pred_check_branch
      %51 = sbr.rel (0) target = $region21
    $region20: #{_fused_forward.1} parent=1 // pred_region
      _
    $region21: #{_fused_forward.1} parent=1 // pred_fallthru
      _
    // Predicated region
    $region22: #{_fused_forward.1} parent=1 // pred_check
      _
    $region23: #{_fused_forward.1} parent=1 // pred_check_branch
      %53 = sbr.rel (0) target = $region25
    $region24: #{_fused_forward.1} parent=1 // pred_region
      _
    $region25: #{_fused_forward.1} parent=1 // pred_fallthru
      _
    // Predicated region
    $region26: #{_fused_forward.1} parent=1 // pred_check
      _
    $region27: #{_fused_forward.1} parent=1 // pred_check_branch
      %55 = sbr.rel (0) target = $region29
    $region28: #{_fused_forward.1} parent=1 // pred_region
      _
    $region29: #{_fused_forward.1} parent=1 // pred_fallthru
      _
    // Predicated region
    $region30: #{_fused_forward.1} parent=1 // pred_check
      _
    $region31: #{_fused_forward.1} parent=1 // pred_check_branch
      %57 = sbr.rel (0) target = $region33
    $region32: #{_fused_forward.1} parent=1 // pred_region
      %58 = dma.done [#allocation3], 32
    $region33: #{_fused_forward.1} parent=1 // pred_fallthru
      _
    // Predicated region
    $region34: #{_fused_forward.1} parent=1 // pred_check
      _
    $region35: #{_fused_forward.1} parent=1 // pred_check_branch
      %60 = sbr.rel (0) target = $region37
    $region36: #{_fused_forward.1} parent=1 // pred_region
      %61 = dma.done [#allocation5], 256
    $region37: #{_fused_forward.1} parent=1 // pred_fallthru
      _
    // Predicated region
    $region38: #{_fused_forward.1} parent=1 // pred_check
      _
    $region39: #{_fused_forward.1} parent=1 // pred_check_branch
      %63 = sbr.rel (0) target = $region41
    $region40: #{_fused_forward.1} parent=1 // pred_region
      %64 = dma.done [#allocation5], 1024
    $region41: #{_fused_forward.1} parent=1 // pred_fallthru
      _
    %v66 = vld [vmem:[#allocation2] sm:$0x3]
    %v67 = vpack.c.bf16 %v66, %v66
    %v68 = vld [vmem:[#allocation4] sm:$0xf]
    %v69 = vld [vmem:[#allocation4 + $0x4] sm:$0xf]
    %v70 = vld [vmem:[#allocation4 + $0x8] sm:$0xf]
    %v71 = vld [vmem:[#allocation4 + $0xc] sm:$0xf]
    %v72 = vld [vmem:[%s2] sm:$0x1]
    %v74 = vlaneseq
    %v75 = vshrl.u32 %v74, 7
    %v76 = vsub.s32 0, %v75
    %v77 = vrot.slane %v72, %v76
    %v83 = vunpack.c.l.b16 %v68
    %v84 = vunpack.c.l.b16 %v69
    %v85 = vunpack.c.l.b16 %v70
    %v86 = vunpack.c.l.b16 %v71
    %v87 = vpack.c.b16 %v84, %v83
    %v88 = vpack.c.b16 %v86, %v85
    %vm91 = vcmask 261120
    %v93 = vsel %vm91, %v67, 0
    %95 = vmatprep.subr.bf16.mxu0 0
    %96 = vmatpush1.bf16.msra.mxu0 0
    %97 = vmatprep.subr.bf16.mxu0 0
    %98 = vmatpush1.bf16.msra.mxu0 0
    %99 = vmatprep.subr.bf16.mxu0 0
    %100 = vmatpush1.bf16.msra.mxu0 0
    %101 = vmatprep.subr.bf16.mxu0 0
    %102 = vmatpush1.bf16.msra.mxu0 0
    %103 = vmatprep.subr.bf16.mxu0 0
    %104 = vmatpush1.bf16.msra.mxu0 0
    %105 = vmatprep.subr.bf16.mxu0 0
    %106 = vmatpush1.bf16.msra.mxu0 0
    %107 = vmatprep.subr.bf16.mxu0 0
    %108 = vmatpush1.bf16.msra.mxu0 %v88
    %109 = vmatprep.subr.bf16.mxu0 0
    %110 = vmatpush1.bf16.msra.mxu0 %v87
    %111 = vmatprep.subr.bf16.mxu0 0
    %112 = vmatpush2.bf16.msra.mxu0 0
    %113 = vmatprep.subr.bf16.mxu0 0
    %114 = vmatpush2.bf16.msra.mxu0 0
    %115 = vmatprep.subr.bf16.mxu0 0
    %116 = vmatpush2.bf16.msra.mxu0 0
    %117 = vmatprep.subr.bf16.mxu0 0
    %118 = vmatpush2.bf16.msra.mxu0 0
    %119 = vmatprep.subr.bf16.mxu0 0
    %120 = vmatpush2.bf16.msra.mxu0 0
    %121 = vmatprep.subr.bf16.mxu0 0
    %122 = vmatpush2.bf16.msra.mxu0 0
    %123 = vmatprep.subr.bf16.mxu0 0
    %124 = vmatpush2.bf16.msra.mxu0 0
    %125 = vmatprep.subr.bf16.mxu0 0
    %126 = vmatpush2.bf16.msra.mxu0 0
    %127 = vmatprep.mubr.bf16.mxu0 0
    %128 = vmatmul.mubr.bf16.gmra.mxu0 %v93
    %v129 = vpop.f32.mrf.mxu0
    %v130 = vadd.f32 %v77, %v129
    %v131 = vpop.f32.mrf.mxu0
    %v132 = vpop.f32.mrf.mxu0
    %v133 = vpop.f32.mrf.mxu0
    %134 = vdwg.mxu0
    %v135 = vmax.f32 %v130, 0.0
    %v136 = vpack.c.bf16 %v135, %v135
    %v137 = vld [vmem:[#allocation6] sm:$0xf]
    %v138 = vld [vmem:[#allocation6 + $0x4] sm:$0xf]
    %v139 = vld [vmem:[#allocation6 + $0x8] sm:$0xf]
    %v140 = vld [vmem:[#allocation6 + $0xc] sm:$0xf]
    %v141 = vld [vmem:[#allocation6 + $0x10] sm:$0xf]
    %v142 = vld [vmem:[#allocation6 + $0x14] sm:$0xf]
    %v143 = vld [vmem:[#allocation6 + $0x18] sm:$0xf]
    %v144 = vld [vmem:[#allocation6 + $0x1c] sm:$0xf]
    %v145 = vld [vmem:[#allocation6 + $0x20] sm:$0xf]
    %v146 = vld [vmem:[#allocation6 + $0x24] sm:$0xf]
    %v147 = vld [vmem:[#allocation6 + $0x28] sm:$0xf]
    %v148 = vld [vmem:[#allocation6 + $0x2c] sm:$0xf]
    %v149 = vld [vmem:[#allocation6 + $0x30] sm:$0xf]
    %v150 = vld [vmem:[#allocation6 + $0x34] sm:$0xf]
    %v151 = vld [vmem:[#allocation6 + $0x38] sm:$0xf]
    %v152 = vld [vmem:[#allocation6 + $0x3c] sm:$0xf]
    %v153 = vld [vmem:[%s4] sm:$0x1]
    %v155 = vlaneseq
    %v156 = vshrl.u32 %v155, 7
    %v157 = vsub.s32 0, %v156
    %v158 = vrot.slane %v153, %v157
    %v160 = vmul.f32 %v135, %v158
    %vm161 = vcmask 1041408
    %v162 = vsel %vm161, %v160, 0.0
    %163 = vadd.xlane.f32.xlu0 %v162
    %v164 = vpop.xlane.xlu0 %163
    %v165 = vadd.f32 %v164, 1.0
    %v166 = vld [vmem:[%s5] sm:$0x1]
    %v168 = vlaneseq
    %v169 = vshrl.u32 %v168, 7
    %v170 = vsub.s32 0, %v169
    %v171 = vrot.slane %v166, %v170
    %v173 = vmul.f32 %v165, %v171
    %v190 = vunpack.c.l.b16 %v137
    %v191 = vunpack.c.l.b16 %v138
    %v192 = vunpack.c.l.b16 %v139
    %v193 = vunpack.c.l.b16 %v140
    %v194 = vunpack.c.l.b16 %v141
    %v195 = vunpack.c.l.b16 %v142
    %v196 = vunpack.c.l.b16 %v143
    %v197 = vunpack.c.l.b16 %v144
    %v198 = vunpack.c.l.b16 %v145
    %v199 = vunpack.c.l.b16 %v146
    %v200 = vunpack.c.l.b16 %v147
    %v201 = vunpack.c.l.b16 %v148
    %v202 = vunpack.c.l.b16 %v149
    %v203 = vunpack.c.l.b16 %v150
    %v204 = vunpack.c.l.b16 %v151
    %v205 = vunpack.c.l.b16 %v152
    %v206 = vpack.c.b16 %v191, %v190
    %v207 = vpack.c.b16 %v193, %v192
    %v208 = vpack.c.b16 %v195, %v194
    %v209 = vpack.c.b16 %v197, %v196
    %v210 = vpack.c.b16 %v199, %v198
    %v211 = vpack.c.b16 %v201, %v200
    %v212 = vpack.c.b16 %v203, %v202
    %v213 = vpack.c.b16 %v205, %v204
    %222 = vmatprep.subr.bf16.mxu0 0
    %223 = vmatpush1.bf16.msra.mxu0 %v213
    %224 = vmatprep.subr.bf16.mxu0 0
    %225 = vmatpush1.bf16.msra.mxu0 %v212
    %226 = vmatprep.subr.bf16.mxu0 0
    %227 = vmatpush1.bf16.msra.mxu0 %v211
    %228 = vmatprep.subr.bf16.mxu0 0
    %229 = vmatpush1.bf16.msra.mxu0 %v210
    %230 = vmatprep.subr.bf16.mxu0 0
    %231 = vmatpush1.bf16.msra.mxu0 %v209
    %232 = vmatprep.subr.bf16.mxu0 0
    %233 = vmatpush1.bf16.msra.mxu0 %v208
    %234 = vmatprep.subr.bf16.mxu0 0
    %235 = vmatpush1.bf16.msra.mxu0 %v207
    %236 = vmatprep.subr.bf16.mxu0 0
    %237 = vmatpush1.bf16.msra.mxu0 %v206
    %238 = vmatprep.subr.bf16.mxu0 0
    %239 = vmatpush2.bf16.msra.mxu0 0
    %240 = vmatprep.subr.bf16.mxu0 0
    %241 = vmatpush2.bf16.msra.mxu0 0
    %242 = vmatprep.subr.bf16.mxu0 0
    %243 = vmatpush2.bf16.msra.mxu0 0
    %244 = vmatprep.subr.bf16.mxu0 0
    %245 = vmatpush2.bf16.msra.mxu0 0
    %246 = vmatprep.subr.bf16.mxu0 0
    %247 = vmatpush2.bf16.msra.mxu0 0
    %248 = vmatprep.subr.bf16.mxu0 0
    %249 = vmatpush2.bf16.msra.mxu0 0
    %250 = vmatprep.subr.bf16.mxu0 0
    %251 = vmatpush2.bf16.msra.mxu0 0
    %252 = vmatprep.subr.bf16.mxu0 0
    %253 = vmatpush2.bf16.msra.mxu0 0
    %254 = vmatprep.mubr.bf16.mxu0 0
    %255 = vmatmul.mubr.bf16.gmra.mxu0 %v136
    %v256 = vpop.f32.mrf.mxu0
    %v257 = vadd.f32 %v173, %v256
    %v258 = vpop.f32.mrf.mxu0
    %v259 = vpop.f32.mrf.mxu0
    %v260 = vpop.f32.mrf.mxu0
    %261 = vdwg.mxu0
    %v262 = vld [vmem:[%s6] sm:$0x1]
    %v264 = vlaneseq
    %v265 = vshrl.u32 %v264, 7
    %v266 = vsub.s32 0, %v265
    %v267 = vrot.slane %v262, %v266
    %v269 = vadd.f32 %v257, %v267
    %270 = vst [vmem:[%s7] sm:$0x3] %v269
    // Predicated region
    $region42: #{_fused_forward.1} parent=1 // pred_check
      _
    $region43: #{_fused_forward.1} parent=1 // pred_check_branch
      %272 = sbr.rel (0) target = $region45
    $region44: #{_fused_forward.1} parent=1 // pred_region
      _
    $region45: #{_fused_forward.1} parent=1 // pred_fallthru
      _
    // Predicated region
    $region46: #{_fused_forward.1} parent=1 // pred_check
      _
    $region47: #{_fused_forward.1} parent=1 // pred_check_branch
      %274 = sbr.rel (0) target = $region49
    $region48: #{_fused_forward.1} parent=1 // pred_region
      _
    $region49: #{_fused_forward.1} parent=1 // pred_fallthru
      _
    %275 = vsyncpa [#allocation3], 1
    %276 = vsyncpa [#allocation5], 1

</llo_original>
